<compile_context>
chip_gen: v7x
topology: tpu7x:2x2x1
jax: 0.10.0
libtpu: 0.0.40
codegen_flags: <defaults>
</compile_context>

<pallas_src>
import functools

import jax
import jax.numpy as jnp
from jax import lax
from jax.experimental import pallas as pl
from jax.experimental.pallas import tpu as pltpu

LANES = 128
TM_ROWS = 4096        # rows per grid step (4096x128 f32 = 2 MiB per input block)

FOCAL_ALPHA = 0.25
FOCAL_GAMMA = 2.0     # implemented as (1 - pt) * (1 - pt)
DICE_SMOOTH = 1.0
MIX_ALPHA = 0.5


def _cdiv(a, b):
    return -(-a // b)


def _partial_sums_dense(x, t):
    """Plain-JAX partial sums for the (<128-element) ragged lane tail."""
    x = x.astype(jnp.float32)
    t = t.astype(jnp.float32)
    e = jnp.exp(-jnp.abs(x))
    relu_x = jnp.maximum(x, 0.0)
    bce = relu_x - x * t + jnp.log1p(e)
    pt = jnp.exp(-bce)
    focal = FOCAL_ALPHA * (1.0 - pt) * (1.0 - pt) * bce
    p = jax.nn.sigmoid(x)
    return jnp.sum(focal), jnp.sum(p * t), jnp.sum(p), jnp.sum(t)


@functools.partial(jax.jit,
                   static_argnames=("assume_binary_targets", "tile_rows"))
def focal_dice_loss(logits, targets, assume_binary_targets=False,
                    tile_rows=TM_ROWS):
    """JAX/Pallas equivalent of FocalDiceLoss(alpha=0.5).forward(logits, targets)."""
    n_elem = logits.size                       # static under jit
    x = logits.reshape(-1)                     # keep native dtype
    t = targets.reshape(-1)

    aligned = (n_elem // LANES) * LANES        # 128-aligned prefix (no padding!)
    n_rem = n_elem - aligned
    rows = aligned // LANES

    focal_sum = jnp.float32(0.0)
    inter_sum = jnp.float32(0.0)
    p_sum = jnp.float32(0.0)
    t_sum = jnp.float32(0.0)

    if rows > 0:
        x2 = x[:aligned].reshape(rows, LANES)  # identity slice in the common case
        t2 = t[:aligned].reshape(rows, LANES)

        if rows <= tile_rows:
            tm = rows                          # single full-extent block
        else:
            tm = max(8, (tile_rows // 8) * 8)  # sublane-aligned tile
        total_steps = _cdiv(rows, tm)
        ragged_rows = rows - (total_steps - 1) * tm
        has_ragged = ragged_rows != tm         # Python-static

        def kernel(x_ref, t_ref, out_ref):
            step = pl.program_id(0)

            @pl.when(step == 0)
            def _init():
                out_ref[...] = jnp.zeros_like(out_ref)

            xv = x_ref[...].astype(jnp.float32)
            tv = t_ref[...].astype(jnp.float32)

            # One exp(-|x|) shared by BCE, sigmoid and pt.
            e = jnp.exp(-jnp.abs(xv))
            d = 1.0 + e
            inv = pl.reciprocal(d, approx=True)      # EUP slot
            inv = inv * (2.0 - d * inv)              # one Newton step -> ~f32 exact
            relu_x = jnp.maximum(xv, 0.0)
            xt = xv * tv
            bce = relu_x - xt + jnp.log1p(e)         # stable BCE-with-logits
            p = jnp.where(xv >= 0.0, inv, e * inv)   # stable sigmoid
            if assume_binary_targets:
                pt = tv * p + (1.0 - tv) * (1.0 - p)  # exact for t in {0,1}
            else:
                pt = jnp.exp(xt - relu_x) * inv       # == exp(-bce), arg <= 0
            omp = 1.0 - pt
            focal = FOCAL_ALPHA * (omp * omp) * bce   # (1-pt)**2 without a power
            inter = p * tv

            def accumulate(f_v, i_v, p_v, t_v):
                if tm % 8 == 0:
                    # (tm,128) -> (8,128) via pure vreg adds (no sublane reduce).
                    def red8(v):
                        return jnp.sum(v.reshape(tm // 8, 8, LANES), axis=0)
                    out_ref[0:8, :] += red8(f_v)
                    out_ref[8:16, :] += red8(i_v)
                    out_ref[16:24, :] += red8(p_v)
                    out_ref[24:32, :] += red8(t_v)
                else:
                    # Tiny-input fallback (rows < 8): single-row accumulators.
                    out_ref[0:1, :] += jnp.sum(f_v, axis=0, keepdims=True)
                    out_ref[8:9, :] += jnp.sum(i_v, axis=0, keepdims=True)
                    out_ref[16:17, :] += jnp.sum(p_v, axis=0, keepdims=True)
                    out_ref[24:25, :] += jnp.sum(t_v, axis=0, keepdims=True)

            if has_ragged:
                last = total_steps - 1

                @pl.when(step != last)
                def _full():
                    accumulate(focal, inter, p, tv)

                @pl.when(step == last)
                def _tail():
                    # Mask only the single ragged block (over-read rows past `rows`).
                    row = lax.broadcasted_iota(jnp.int32, (tm, LANES), 0)
                    m = row < ragged_rows
                    zero = jnp.zeros_like(focal)
                    accumulate(jnp.where(m, focal, zero),
                               jnp.where(m, inter, zero),
                               jnp.where(m, p, zero),
                               jnp.where(m, tv, zero))
            else:
                accumulate(focal, inter, p, tv)

        n_trans = 2 if assume_binary_targets else 3
        cost = pl.CostEstimate(
            flops=18 * aligned,
            transcendentals=n_trans * aligned,
            bytes_accessed=aligned * (x2.dtype.itemsize + t2.dtype.itemsize)
            + 32 * LANES * 4,
        )

        sums = pl.pallas_call(
            kernel,
            out_shape=jax.ShapeDtypeStruct((32, LANES), jnp.float32),
            grid_spec=pltpu.PrefetchScalarGridSpec(
                num_scalar_prefetch=0,
                grid=(total_steps,),
                in_specs=[
                    pl.BlockSpec((tm, LANES), lambda i: (i, 0)),
                    pl.BlockSpec((tm, LANES), lambda i: (i, 0)),
                ],
                out_specs=pl.BlockSpec((32, LANES), lambda i: (0, 0)),
            ),
            compiler_params=pltpu.CompilerParams(
                dimension_semantics=("arbitrary",),
                vmem_limit_bytes=32 * 1024 * 1024,
            ),
            cost_estimate=cost,
        )(x2, t2)

        focal_sum = jnp.sum(sums[0:8, :])
        inter_sum = jnp.sum(sums[8:16, :])
        p_sum = jnp.sum(sums[16:24, :])
        t_sum = jnp.sum(sums[24:32, :])

    if n_rem:
        fr, ir, pr, tr = _partial_sums_dense(x[aligned:], t[aligned:])
        focal_sum = focal_sum + fr
        inter_sum = inter_sum + ir
        p_sum = p_sum + pr
        t_sum = t_sum + tr

    focal = focal_sum / jnp.float32(n_elem)
    dice = (2.0 * inter_sum + DICE_SMOOTH) / (p_sum + t_sum + DICE_SMOOTH)
    return MIX_ALPHA * focal + (1.0 - MIX_ALPHA) * (1.0 - dice)


def _reference(logits, targets):
    """Plain-JAX reference matching the PyTorch module."""
    x = logits.astype(jnp.float32)
    t = targets.astype(jnp.float32)
    bce = jnp.maximum(x, 0.0) - x * t + jnp.log1p(jnp.exp(-jnp.abs(x)))
    pt = jnp.exp(-bce)
    focal = jnp.mean(FOCAL_ALPHA * (1.0 - pt) ** FOCAL_GAMMA * bce)
    p = jax.nn.sigmoid(x)
    inter = jnp.sum(p * t)
    dice = (2.0 * inter + DICE_SMOOTH) / (jnp.sum(p) + jnp.sum(t) + DICE_SMOOTH)
    return MIX_ALPHA * focal + (1.0 - MIX_ALPHA) * (1.0 - dice)


if __name__ == "__main__":
    key = jax.random.PRNGKey(0)
    k1, k2, k3, k4 = jax.random.split(key, 4)

    # Primary check: small segmentation-style NCHW logits + binary targets
    # (2048 elements -> 128-aligned, single-step kernel, no masking path).
    logits = jax.random.normal(k1, (2, 4, 16, 16), dtype=jnp.float32)
    targets = (jax.random.uniform(k2, (2, 4, 16, 16)) > 0.5).astype(jnp.float32)

    loss = jax.block_until_ready(focal_dice_loss(logits, targets))
    ref = jax.block_until_ready(_reference(logits, targets))
    assert jnp.allclose(loss, ref, rtol=1e-5, atol=1e-6), (loss, ref)

    # Secondary check: exercises the multi-step grid, the masked ragged last
    # block, the <128-element lane remainder, and the binary-target fast path.
    logits2 = jax.random.normal(k3, (2, 3, 17, 19), dtype=jnp.float32)
    targets2 = (jax.random.uniform(k4, (2, 3, 17, 19)) > 0.5).astype(jnp.float32)

    loss2 = jax.block_until_ready(
        focal_dice_loss(logits2, targets2, assume_binary_targets=True,
                        tile_rows=8))
    ref2 = jax.block_until_ready(_reference(logits2, targets2))
    assert jnp.allclose(loss2, ref2, rtol=1e-5, atol=1e-6), (loss2, ref2)

    print("KERNEL_OK")
</pallas_src>

<mosaic_0001>
module attributes {stable_mosaic.version = 11 : i64} {
  func.func @kernel(%arg0: i32, %arg1: memref<16x128xf32, #tpu.memory_space<vmem>>, %arg2: memref<16x128xf32, #tpu.memory_space<vmem>>, %arg3: memref<32x128xf32, #tpu.memory_space<vmem>>) attributes {dimension_semantics = [#tpu.dimension_semantics<arbitrary>], iteration_bounds = array<i64: 1>, scalar_prefetch = 0 : i64, scratch_operands = 0 : i64, tpu.core_type = #tpu.core_type<tc>, window_params = [{transform_indices = @transform_0, window_bounds = array<i64: 16, 128>}, {transform_indices = @transform_1, window_bounds = array<i64: 16, 128>}, {pipeline_mode = #tpu.pipeline_mode<synchronous>, transform_indices = @transform_2, window_bounds = array<i64: 32, 128>}]} {
    %c0_i32 = arith.constant 0 : i32
    %0 = arith.cmpi eq, %arg0, %c0_i32 : i32
    %1 = arith.extui %0 : i1 to i32
    %c0_i32_0 = arith.constant 0 : i32
    %2 = arith.cmpi ne, %1, %c0_i32_0 : i32
    scf.if %2 {
      %cst_27 = arith.constant 0.000000e+00 : f32
      %56 = vector.broadcast %cst_27 : f32 to vector<32x128xf32>
      %c0_28 = arith.constant 0 : index
      %c0_29 = arith.constant 0 : index
      %57 = vector.load %arg3[%c0_28, %c0_29] : memref<32x128xf32, #tpu.memory_space<vmem>>, vector<32x128xf32>
      tpu.vector_store %arg3[%c0_28, %c0_29], %56 {strides = array<i32>} : memref<32x128xf32, #tpu.memory_space<vmem>>, vector<32x128xf32>,
    } else {
    }
    %c0 = arith.constant 0 : index
    %c0_1 = arith.constant 0 : index
    %3 = vector.load %arg1[%c0, %c0_1] : memref<16x128xf32, #tpu.memory_space<vmem>>, vector<16x128xf32>
    %c0_2 = arith.constant 0 : index
    %c0_3 = arith.constant 0 : index
    %4 = vector.load %arg2[%c0_2, %c0_3] : memref<16x128xf32, #tpu.memory_space<vmem>>, vector<16x128xf32>
    %5 = math.absf %3 : vector<16x128xf32>
    %cst = arith.constant 0.000000e+00 : f32
    %6 = vector.broadcast %cst : f32 to vector<16x128xf32>
    %7 = arith.subf %6, %5 : vector<16x128xf32>
    %8 = math.exp %7 : vector<16x128xf32>
    %cst_4 = arith.constant 1.000000e+00 : f32
    %9 = vector.broadcast %cst_4 : f32 to vector<16x128xf32>
    %10 = arith.addf %9, %8 : vector<16x128xf32>
    %11 = tpu.reciprocal %10 {approx = true} : vector<16x128xf32> -> vector<16x128xf32>
    %12 = arith.mulf %10, %11 : vector<16x128xf32>
    %cst_5 = arith.constant 2.000000e+00 : f32
    %13 = vector.broadcast %cst_5 : f32 to vector<16x128xf32>
    %14 = arith.subf %13, %12 : vector<16x128xf32>
    %15 = arith.mulf %11, %14 : vector<16x128xf32>
    %cst_6 = arith.constant 0.000000e+00 : f32
    %16 = vector.broadcast %cst_6 : f32 to vector<16x128xf32>
    %17 = arith.maximumf %3, %16 : vector<16x128xf32>
    %18 = arith.mulf %3, %4 : vector<16x128xf32>
    %19 = arith.subf %17, %18 : vector<16x128xf32>
    %20 = math.log1p %8 : vector<16x128xf32>
    %21 = arith.addf %19, %20 : vector<16x128xf32>
    %cst_7 = arith.constant 0.000000e+00 : f32
    %22 = vector.broadcast %cst_7 : f32 to vector<16x128xf32>
    %23 = arith.cmpf oge, %3, %22 : vector<16x128xf32>
    %24 = arith.mulf %8, %15 : vector<16x128xf32>
    %25 = arith.select %23, %15, %24 : vector<16x128xi1>, vector<16x128xf32>
    %26 = arith.subf %18, %17 : vector<16x128xf32>
    %27 = math.exp %26 : vector<16x128xf32>
    %28 = arith.mulf %27, %15 : vector<16x128xf32>
    %cst_8 = arith.constant 1.000000e+00 : f32
    %29 = vector.broadcast %cst_8 : f32 to vector<16x128xf32>
    %30 = arith.subf %29, %28 : vector<16x128xf32>
    %31 = arith.mulf %30, %30 : vector<16x128xf32>
    %cst_9 = arith.constant 2.500000e-01 : f32
    %32 = vector.broadcast %cst_9 : f32 to vector<16x128xf32>
    %33 = arith.mulf %32, %31 : vector<16x128xf32>
    %34 = arith.mulf %33, %21 : vector<16x128xf32>
    %35 = arith.mulf %25, %4 : vector<16x128xf32>
    %c0_10 = arith.constant 0 : index
    %c0_11 = arith.constant 0 : index
    %36 = vector.load %arg3[%c0_10, %c0_11] : memref<32x128xf32, #tpu.memory_space<vmem>>, vector<8x128xf32>
    %37 = vector.shape_cast %34 : vector<16x128xf32> to vector<2x8x128xf32>
    %cst_12 = arith.constant dense<0.000000e+00> : vector<8x128xf32>
    %38 = vector.multi_reduction <add>, %37, %cst_12 [0] : vector<2x8x128xf32> to vector<8x128xf32>
    %39 = arith.addf %36, %38 : vector<8x128xf32>
    %c0_13 = arith.constant 0 : index
    %c0_14 = arith.constant 0 : index
    %40 = vector.load %arg3[%c0_13, %c0_14] : memref<32x128xf32, #tpu.memory_space<vmem>>, vector<8x128xf32>
    tpu.vector_store %arg3[%c0_13, %c0_14], %39 {strides = array<i32>} : memref<32x128xf32, #tpu.memory_space<vmem>>, vector<8x128xf32>,
    %c8 = arith.constant 8 : index
    %c0_15 = arith.constant 0 : index
    %41 = vector.load %arg3[%c8, %c0_15] : memref<32x128xf32, #tpu.memory_space<vmem>>, vector<8x128xf32>
    %42 = vector.shape_cast %35 : vector<16x128xf32> to vector<2x8x128xf32>
    %cst_16 = arith.constant dense<0.000000e+00> : vector<8x128xf32>
    %43 = vector.multi_reduction <add>, %42, %cst_16 [0] : vector<2x8x128xf32> to vector<8x128xf32>
    %44 = arith.addf %41, %43 : vector<8x128xf32>
    %c8_17 = arith.constant 8 : index
    %c0_18 = arith.constant 0 : index
    %45 = vector.load %arg3[%c8_17, %c0_18] : memref<32x128xf32, #tpu.memory_space<vmem>>, vector<8x128xf32>
    tpu.vector_store %arg3[%c8_17, %c0_18], %44 {strides = array<i32>} : memref<32x128xf32, #tpu.memory_space<vmem>>, vector<8x128xf32>,
    %c16 = arith.constant 16 : index
    %c0_19 = arith.constant 0 : index
    %46 = vector.load %arg3[%c16, %c0_19] : memref<32x128xf32, #tpu.memory_space<vmem>>, vector<8x128xf32>
    %47 = vector.shape_cast %25 : vector<16x128xf32> to vector<2x8x128xf32>
    %cst_20 = arith.constant dense<0.000000e+00> : vector<8x128xf32>
    %48 = vector.multi_reduction <add>, %47, %cst_20 [0] : vector<2x8x128xf32> to vector<8x128xf32>
    %49 = arith.addf %46, %48 : vector<8x128xf32>
    %c16_21 = arith.constant 16 : index
    %c0_22 = arith.constant 0 : index
    %50 = vector.load %arg3[%c16_21, %c0_22] : memref<32x128xf32, #tpu.memory_space<vmem>>, vector<8x128xf32>
    tpu.vector_store %arg3[%c16_21, %c0_22], %49 {strides = array<i32>} : memref<32x128xf32, #tpu.memory_space<vmem>>, vector<8x128xf32>,
    %c24 = arith.constant 24 : index
    %c0_23 = arith.constant 0 : index
    %51 = vector.load %arg3[%c24, %c0_23] : memref<32x128xf32, #tpu.memory_space<vmem>>, vector<8x128xf32>
    %52 = vector.shape_cast %4 : vector<16x128xf32> to vector<2x8x128xf32>
    %cst_24 = arith.constant dense<0.000000e+00> : vector<8x128xf32>
    %53 = vector.multi_reduction <add>, %52, %cst_24 [0] : vector<2x8x128xf32> to vector<8x128xf32>
    %54 = arith.addf %51, %53 : vector<8x128xf32>
    %c24_25 = arith.constant 24 : index
    %c0_26 = arith.constant 0 : index
    %55 = vector.load %arg3[%c24_25, %c0_26] : memref<32x128xf32, #tpu.memory_space<vmem>>, vector<8x128xf32>
    tpu.vector_store %arg3[%c24_25, %c0_26], %54 {strides = array<i32>} : memref<32x128xf32, #tpu.memory_space<vmem>>, vector<8x128xf32>,
    return
  }
  func.func @transform_0(%arg0: i32) -> (i32, i32) {
    %c0_i32 = arith.constant 0 : i32
    %c0_i32_0 = arith.constant 0 : i32
    return %arg0, %c0_i32 : i32, i32
  }
  func.func @transform_1(%arg0: i32) -> (i32, i32) {
    %c0_i32 = arith.constant 0 : i32
    %c0_i32_0 = arith.constant 0 : i32
    return %arg0, %c0_i32 : i32, i32
  }
  func.func @transform_2(%arg0: i32) -> (i32, i32) {
    %c0_i32 = arith.constant 0 : i32
    %c0_i32_0 = arith.constant 0 : i32
    %c0_i32_1 = arith.constant 0 : i32
    return %c0_i32, %c0_i32_0 : i32, i32
  }
}

</mosaic_0001>

<llo_original>
// kernel: focal_dice_loss.1
$region0: #{focal_dice_loss.1}
  #allocation0 [shape = 'u32[]', space=smem, size = 0x4, offset = 0x4, fixed_abs, tag = 'smem constant byte address 0x4 - core index']
  #allocation1 [shape = 'u32[144,128]{1,0:T(1,128)}', space=vmem, size = 0x12000, scoped, tag = 'internal scratch']
  %s0 = inlined_call_operand.vmem [shape: f32[16,128], index: 0, kind: input, shape index: {}]
  %s1 = inlined_call_operand.vmem [shape: f32[16,128], index: 1, kind: input, shape index: {}]
  %s2 = inlined_call_operand.vmem [shape: f32[32,128], index: 2, kind: output, shape index: {}]
  %s3 = sld [smem:[#allocation0]]
  $region22: #{focal_dice_loss.1} parent=0
    _
  %s5 = ssub.s32 1, %s3
  %s6 = scalar_select 0, %s5, %s3
  // Predicated region
  $region2: #{focal_dice_loss.1} parent=0 // pred_check
    _
  $region3: #{focal_dice_loss.1} parent=0 // pred_check_branch
    %8 = sbr.rel (0) target = $region5
  $region4: #{focal_dice_loss.1} parent=0 // pred_region
    _
  $region5: #{focal_dice_loss.1} parent=0 // pred_fallthru
    _
  // Predicated region
  $region6: #{focal_dice_loss.1} parent=0 // pred_check
    _
  $region7: #{focal_dice_loss.1} parent=0 // pred_check_branch
    %10 = sbr.rel (0) target = $region9
  $region8: #{focal_dice_loss.1} parent=0 // pred_region
    _
  $region9: #{focal_dice_loss.1} parent=0 // pred_fallthru
    _
  %p11 = scmp.eq.s32.totalorder 0, 0
  // Predicated region
  $region10: #{focal_dice_loss.1} parent=0 // pred_check
    %p12 = pneg %p11
  $region11: #{focal_dice_loss.1} parent=0 // pred_check_branch
    %14 = sbr.rel (%p12) target = $region13
  $region12: #{focal_dice_loss.1} parent=0 // pred_region
    %15 = vst [vmem:[%s2] sm:$0xff] 0.0
    %16 = vst [vmem:[%s2 + $0x8] sm:$0xff] 0.0
    %17 = vst [vmem:[%s2 + $0x10] sm:$0xff] 0.0
    %18 = vst [vmem:[%s2 + $0x18] sm:$0xff] 0.0
  $region13: #{focal_dice_loss.1} parent=0 // pred_fallthru
    _
  %v19 = vld [vmem:[%s0] sm:$0xff]
  %v20 = vld [vmem:[%s0 + $0x8] sm:$0xff]
  %v21 = vld [vmem:[%s1] sm:$0xff]
  %v22 = vld [vmem:[%s1 + $0x8] sm:$0xff]
  %v23 = vand.u32 2147483647, %v19
  %v24 = vand.u32 2147483647, %v20
  %v25 = vsub.f32 0.0, %v23
  %v26 = vsub.f32 0.0, %v24
  %v27 = vmul.f32 %v25, 1.442695
  %v28 = vpow.pop %v27
  %v29 = vmul.f32 %v26, 1.442695
  %v30 = vpow.pop %v29
  %v31 = vadd.f32 %v28, 1.0
  %v32 = vadd.f32 %v30, 1.0
  %v33 = vrcp.pop %v31
  %v34 = vrcp.pop %v32
  %v35 = vmul.f32 %v31, %v33
  %v36 = vmul.f32 %v32, %v34
  %v37 = vsub.f32 2.0, %v35
  %v38 = vsub.f32 2.0, %v36
  %v39 = vmul.f32 %v33, %v37
  %v40 = vmul.f32 %v34, %v38
  %v41 = vmax.f32 %v19, 0.0
  %v42 = vmax.f32 %v20, 0.0
  %v43 = vmul.f32 %v19, %v21
  %v44 = vmul.f32 %v20, %v22
  %v45 = vsub.f32 %v41, %v43
  %v46 = vsub.f32 %v42, %v44
  %v47 = vadd.f32 %v28, 1.0
  %v48 = vlog2.pop %v47
  %v49 = vmul.f32 %v48, 0.6931472
  %v50 = vmul.f32 -0.5, %v28
  %v51 = vadd.f32 %v50, 1.0
  %v52 = vmul.f32 %v51, %v28
  %v53 = vand.u32 2147483647, %v28
  %vm54 = vcmp.lt.f32.partialorder %v53, 0.0004427343
  %v55 = vsel %vm54, %v52, %v49
  %v56 = vadd.f32 %v30, 1.0
  %v57 = vlog2.pop %v56
  %v58 = vmul.f32 %v57, 0.6931472
  %v59 = vmul.f32 -0.5, %v30
  %v60 = vadd.f32 %v59, 1.0
  %v61 = vmul.f32 %v60, %v30
  %v62 = vand.u32 2147483647, %v30
  %vm63 = vcmp.lt.f32.partialorder %v62, 0.0004427343
  %v64 = vsel %vm63, %v61, %v58
  %v65 = vadd.f32 %v45, %v55
  %v66 = vadd.f32 %v46, %v64
  %vm67 = vcmp.ge.f32.partialorder %v19, 0.0
  %vm68 = vcmp.ge.f32.partialorder %v20, 0.0
  %v69 = vmul.f32 %v28, %v39
  %v70 = vmul.f32 %v30, %v40
  %v71 = vsel %vm67, %v39, %v69
  %v72 = vsel %vm68, %v40, %v70
  %v73 = vsub.f32 %v43, %v41
  %v74 = vsub.f32 %v44, %v42
  %v75 = vmul.f32 %v73, 1.442695
  %v76 = vpow.pop %v75
  %v77 = vmul.f32 %v74, 1.442695
  %v78 = vpow.pop %v77
  %v79 = vmul.f32 %v76, %v39
  %v80 = vmul.f32 %v78, %v40
  %v81 = vsub.f32 1.0, %v79
  %v82 = vsub.f32 1.0, %v80
  %v83 = vmul.f32 %v81, %v81
  %v84 = vmul.f32 %v82, %v82
  %v85 = vmul.f32 %v83, 0.25
  %v86 = vmul.f32 %v84, 0.25
  %v87 = vmul.f32 %v85, %v65
  %v88 = vmul.f32 %v86, %v66
  %v89 = vmul.f32 %v71, %v21
  %v90 = vmul.f32 %v72, %v22
  %v91 = vld [vmem:[%s2] sm:$0xff]
  %v92 = vadd.f32 %v87, %v88
  %v93 = vadd.f32 %v91, %v92
  %94 = vst [vmem:[%s2] sm:$0xff] %v93
  %v95 = vld [vmem:[%s2 + $0x8] sm:$0xff]
  %v96 = vadd.f32 %v89, %v90
  %v97 = vadd.f32 %v95, %v96
  %98 = vst [vmem:[%s2 + $0x8] sm:$0xff] %v97
  %v99 = vld [vmem:[%s2 + $0x10] sm:$0xff]
  %v100 = vadd.f32 %v71, %v72
  %v101 = vadd.f32 %v99, %v100
  %102 = vst [vmem:[%s2 + $0x10] sm:$0xff] %v101
  %v103 = vld [vmem:[%s2 + $0x18] sm:$0xff]
  %v104 = vadd.f32 %v21, %v22
  %v105 = vadd.f32 %v103, %v104
  %106 = vst [vmem:[%s2 + $0x18] sm:$0xff] %v105
  // Predicated region
  $region14: #{focal_dice_loss.1} parent=0 // pred_check
    _
  $region15: #{focal_dice_loss.1} parent=0 // pred_check_branch
    %108 = sbr.rel (0) target = $region17
  $region16: #{focal_dice_loss.1} parent=0 // pred_region
    _
  $region17: #{focal_dice_loss.1} parent=0 // pred_fallthru
    _
  // Predicated region
  $region18: #{focal_dice_loss.1} parent=0 // pred_check
    _
  $region19: #{focal_dice_loss.1} parent=0 // pred_check_branch
    %110 = sbr.rel (0) target = $region21
  $region20: #{focal_dice_loss.1} parent=0 // pred_region
    _
  $region21: #{focal_dice_loss.1} parent=0 // pred_fallthru
    _

</llo_original>
